<compile_context>
chip_gen: v5e
topology: v5e:2x2
jax: 0.10.0
libtpu: 0.0.40
codegen_flags: <defaults>
</compile_context>

<pallas_src>
import jax
import jax.numpy as jnp
from jax.experimental import pallas as pl
from jax.experimental.pallas import tpu as pltpu

INFINITY_NUMBER = 1e12  # constant.INFINITY_NUMBER (pooling fill is -INFINITY_NUMBER)


# ---------------- fused forward kernel ----------------

def _fused_forward_kernel(adj_ref, h0_ref, keep_subj_ref, keep_obj_ref,
                          w1_ref, b1_ref, w2_ref, b2_ref,
                          mlp_w_ref, mlp_b_ref, cls_w_ref, cls_b_ref,
                          logits_ref, hout_ref):
    # adj_ref:   (B, T, T)     h0_ref: (B*T, Din)
    # keep_*:    (B*T, 1) f32  (1.0 = keep this row in the masked max)
    # w1/w2:     (Din,H)/(H,H) b1/b2: (1,H)
    # mlp_w:     (3H, H)       mlp_b: (1,H)    cls_w: (H,C)   cls_b: (1,C)
    # logits_ref:(B, C)        hout_ref: (B, H)
    B = adj_ref.shape[0]
    T = adj_ref.shape[1]
    H = w1_ref.shape[1]

    # ---- adjacency statistics: denom and pooling mask, kept in VMEM ----
    adjs = []
    inv_denoms = []       # per-batch (T,1): 1 / (adj.sum(2) + 1)
    keep_pools = []       # per-batch (T,1) bool: keep where adj.sum(2)+adj.sum(1) != 0
    for b in range(B):
        a = adj_ref[b]                                    # (T, T)
        adjs.append(a)
        rs = jnp.sum(a, axis=1, keepdims=True)            # adj.sum(2) -> (T,1)
        cs = jnp.sum(a, axis=0)[:, None]                  # adj.sum(1) -> (T,1)
        inv_denoms.append(pl.reciprocal(rs + 1.0, approx=True))
        keep_pools.append((rs + cs) != 0.0)
    inv_denom = jnp.concatenate(inv_denoms, axis=0)       # (B*T, 1)

    # ---- GCN layers (2 layers; batch folded into matmul M dimension) ----
    h = h0_ref[...]                                       # (B*T, Din)
    for (w_ref, bias_ref) in ((w1_ref, b1_ref), (w2_ref, b2_ref)):
        w = w_ref[...]
        bias2 = 2.0 * bias_ref[...]                       # W(Ax)+b + W(x)+b == (Ax+x)W + 2b
        ax_parts = []
        for b in range(B):
            hb = h[b * T:(b + 1) * T, :]                  # (T, Din_l)
            ax_parts.append(
                jnp.dot(adjs[b], hb, preferred_element_type=jnp.float32) + hb)
        ax = jnp.concatenate(ax_parts, axis=0)            # (B*T, Din_l)
        axw = jnp.dot(ax, w, preferred_element_type=jnp.float32) + bias2
        h = jnp.maximum(axw * inv_denom, 0.0)             # /denom, ReLU

    # ---- masked max pooling with 3 masks (reference keeps -INF for fully
    #      masked rows; mirrored here) ----
    keep_subj = keep_subj_ref[...]                        # (B*T, 1)
    keep_obj = keep_obj_ref[...]
    fill = jnp.float32(-INFINITY_NUMBER)
    h_parts, s_parts, o_parts = [], [], []
    for b in range(B):
        hb = h[b * T:(b + 1) * T, :]                      # (T, H)
        ks = keep_subj[b * T:(b + 1) * T, :] > 0.0
        ko = keep_obj[b * T:(b + 1) * T, :] > 0.0
        h_parts.append(jnp.max(jnp.where(keep_pools[b], hb, fill),
                               axis=0, keepdims=True))
        s_parts.append(jnp.max(jnp.where(ks, hb, fill), axis=0, keepdims=True))
        o_parts.append(jnp.max(jnp.where(ko, hb, fill), axis=0, keepdims=True))
    h_out = jnp.concatenate(h_parts, axis=0)              # (B, H)
    subj_out = jnp.concatenate(s_parts, axis=0)           # (B, H)
    obj_out = jnp.concatenate(o_parts, axis=0)            # (B, H)

    # ---- out_mlp: Linear(3H, H) + ReLU, with the 3H concat folded into
    #      three matmuls against row-blocks of the weight (no lane concat) ----
    w_all = mlp_w_ref[...]                                # (3H, H)
    hid = (jnp.dot(h_out, w_all[0:H, :], preferred_element_type=jnp.float32)
           + jnp.dot(subj_out, w_all[H:2 * H, :], preferred_element_type=jnp.float32)
           + jnp.dot(obj_out, w_all[2 * H:3 * H, :], preferred_element_type=jnp.float32)
           + mlp_b_ref[...])
    hid = jnp.maximum(hid, 0.0)

    # ---- classifier ----
    logits_ref[...] = (jnp.dot(hid, cls_w_ref[...], preferred_element_type=jnp.float32)
                       + cls_b_ref[...])
    hout_ref[...] = h_out


# ---------------- wrapper ----------------

def gcn_classifier_fused(params, adj, h0_flat, keep_subj, keep_obj):
    B, T, _ = adj.shape
    BT, Din = h0_flat.shape
    assert len(params["gcn_layers"]) == 2, "fused kernel is specialized for num_layers=2"
    (w1, b1), (w2, b2) = params["gcn_layers"]
    H = w1.shape[1]
    C = params["cls_w"].shape[1]

    logits, h_out = pl.pallas_call(
        _fused_forward_kernel,
        out_shape=(jax.ShapeDtypeStruct((B, C), jnp.float32),
                   jax.ShapeDtypeStruct((B, H), jnp.float32)),
        grid=(1,),
        in_specs=[
            pl.BlockSpec((B, T, T), lambda i: (0, 0, 0)),
            pl.BlockSpec((BT, Din), lambda i: (0, 0)),
            pl.BlockSpec((BT, 1), lambda i: (0, 0)),
            pl.BlockSpec((BT, 1), lambda i: (0, 0)),
            pl.BlockSpec(w1.shape, lambda i: (0, 0)),
            pl.BlockSpec(b1.shape, lambda i: (0, 0)),
            pl.BlockSpec(w2.shape, lambda i: (0, 0)),
            pl.BlockSpec(b2.shape, lambda i: (0, 0)),
            pl.BlockSpec(params["mlp_w"].shape, lambda i: (0, 0)),
            pl.BlockSpec(params["mlp_b"].shape, lambda i: (0, 0)),
            pl.BlockSpec(params["cls_w"].shape, lambda i: (0, 0)),
            pl.BlockSpec(params["cls_b"].shape, lambda i: (0, 0)),
        ],
        out_specs=(pl.BlockSpec((B, C), lambda i: (0, 0)),
                   pl.BlockSpec((B, H), lambda i: (0, 0))),
        compiler_params=pltpu.CompilerParams(dimension_semantics=("arbitrary",)),
    )(adj, h0_flat, keep_subj, keep_obj, w1, b1, w2, b2,
      params["mlp_w"], params["mlp_b"], params["cls_w"], params["cls_b"])
    return logits, h_out


# ---------------- full forward (embedding glue + fused kernel) ----------------

def gcn_classifier_forward(params, words, pos, ner, adj, subj_pos, obj_pos):
    # embedding lookups + concat stay in XLA (gather has no cheap Pallas form here)
    word_embs = jnp.take(params["emb"], words, axis=0)
    pos_embs = jnp.take(params["pos_emb"], pos, axis=0)
    ner_embs = jnp.take(params["ner_emb"], ner, axis=0)
    h0 = jnp.concatenate([word_embs, pos_embs, ner_embs], axis=2)   # (B, T, in_dim)
    B, T, Din = h0.shape
    h0_flat = h0.reshape(B * T, Din)

    # subj_mask = subj_pos.eq(0).eq(0) masks non-zero positions -> keep where == 0
    keep_subj = (subj_pos == 0).astype(jnp.float32).reshape(B * T, 1)
    keep_obj = (obj_pos == 0).astype(jnp.float32).reshape(B * T, 1)

    return gcn_classifier_fused(params, adj.astype(jnp.float32),
                                h0_flat, keep_subj, keep_obj)


# ---------------- deterministic setup ----------------

def make_params(key, vocab, n_pos, n_ner, emb_dim, pos_dim, ner_dim,
                hidden, num_layers, num_class):
    ks = jax.random.split(key, 8 + 2 * num_layers)
    in_dim = emb_dim + pos_dim + ner_dim

    def u(k, shape, s=0.1):
        return jax.random.uniform(k, shape, jnp.float32, -s, s)

    emb = jax.random.uniform(ks[0], (vocab, emb_dim), jnp.float32, -1.0, 1.0)
    emb = emb.at[0].set(0.0)  # padding_idx = 0
    pos_emb = u(ks[1], (n_pos, pos_dim), 0.5)
    ner_emb = u(ks[2], (n_ner, ner_dim), 0.5)

    gcn_layers = []
    for l in range(num_layers):
        din = in_dim if l == 0 else hidden
        gcn_layers.append((u(ks[3 + 2 * l], (din, hidden)),
                           u(ks[4 + 2 * l], (1, hidden))))

    mlp_w = u(ks[3 + 2 * num_layers], (hidden * 3, hidden))
    mlp_b = u(ks[4 + 2 * num_layers], (1, hidden))
    cls_w = u(ks[5 + 2 * num_layers], (hidden, num_class))
    cls_b = u(ks[6 + 2 * num_layers], (1, num_class))

    return dict(emb=emb, pos_emb=pos_emb, ner_emb=ner_emb,
                gcn_layers=gcn_layers, mlp_w=mlp_w, mlp_b=mlp_b,
                cls_w=cls_w, cls_b=cls_b)


if __name__ == "__main__":
    B, T = 2, 16               # batch, ADJ_SIZE (sequence length)
    VOCAB, N_POS, N_NER = 50, 10, 8
    EMB, POS, NER = 24, 4, 4   # in_dim = 32
    HIDDEN, NUM_LAYERS, NUM_CLASS = 32, 2, 8

    key = jax.random.PRNGKey(0)
    kp, kw, kpo, kn, ka, klen = jax.random.split(key, 6)

    params = make_params(kp, VOCAB, N_POS, N_NER, EMB, POS, NER,
                         HIDDEN, NUM_LAYERS, NUM_CLASS)

    # token inputs; positions >= length are padding (index 0)
    lengths = jnp.array([12, 10])
    valid = (jnp.arange(T)[None, :] < lengths[:, None]).astype(jnp.int32)   # (B,T)
    words = jax.random.randint(kw, (B, T), 1, VOCAB, dtype=jnp.int32) * valid
    pos = jax.random.randint(kpo, (B, T), 0, N_POS, dtype=jnp.int32) * valid
    ner = jax.random.randint(kn, (B, T), 0, N_NER, dtype=jnp.int32) * valid

    # adjacency: random, symmetrized via clip(a + a.T, 0, 1), zeroed on padding
    a = (jax.random.uniform(ka, (B, T, T)) < 0.3).astype(jnp.float32)
    adj = jnp.clip(a + jnp.swapaxes(a, 1, 2), 0.0, 1.0)
    vmask = valid.astype(jnp.float32)
    adj = adj * vmask[:, :, None] * vmask[:, None, :]

    # subj/obj position encodings (0 marks the entity span)
    subj_pos = jnp.arange(T, dtype=jnp.int32)[None, :] - jnp.array([[2], [5]], jnp.int32)
    obj_pos = jnp.arange(T, dtype=jnp.int32)[None, :] - jnp.array([[7], [1]], jnp.int32)

    forward = jax.jit(gcn_classifier_forward)
    logits, pooling_output = forward(params, words, pos, ner, adj, subj_pos, obj_pos)
    jax.block_until_ready((logits, pooling_output))

    assert logits.shape == (B, NUM_CLASS)
    assert pooling_output.shape == (B, HIDDEN)
    print("KERNEL_OK")
</pallas_src>

<mosaic_0001>
module attributes {stable_mosaic.version = 11 : i64} {
  func.func @_fused_forward_kernel(%arg0: i32, %arg1: memref<2x16x16xf32, #tpu.memory_space<vmem>>, %arg2: memref<32x32xf32, #tpu.memory_space<vmem>>, %arg3: memref<32x1xf32, #tpu.memory_space<vmem>>, %arg4: memref<32x1xf32, #tpu.memory_space<vmem>>, %arg5: memref<32x32xf32, #tpu.memory_space<vmem>>, %arg6: memref<1x32xf32, #tpu.memory_space<vmem>>, %arg7: memref<32x32xf32, #tpu.memory_space<vmem>>, %arg8: memref<1x32xf32, #tpu.memory_space<vmem>>, %arg9: memref<96x32xf32, #tpu.memory_space<vmem>>, %arg10: memref<1x32xf32, #tpu.memory_space<vmem>>, %arg11: memref<32x8xf32, #tpu.memory_space<vmem>>, %arg12: memref<1x8xf32, #tpu.memory_space<vmem>>, %arg13: memref<2x8xf32, #tpu.memory_space<vmem>>, %arg14: memref<2x32xf32, #tpu.memory_space<vmem>>) attributes {dimension_semantics = [#tpu.dimension_semantics<arbitrary>], iteration_bounds = array<i64: 1>, scalar_prefetch = 0 : i64, scratch_operands = 0 : i64, tpu.core_type = #tpu.core_type<tc>, window_params = [{pipeline_mode = #tpu.pipeline_mode<synchronous>, transform_indices = @transform_0, window_bounds = array<i64: 2, 16, 16>}, {pipeline_mode = #tpu.pipeline_mode<synchronous>, transform_indices = @transform_1, window_bounds = array<i64: 32, 32>}, {pipeline_mode = #tpu.pipeline_mode<synchronous>, transform_indices = @transform_2, window_bounds = array<i64: 32, 1>}, {pipeline_mode = #tpu.pipeline_mode<synchronous>, transform_indices = @transform_3, window_bounds = array<i64: 32, 1>}, {pipeline_mode = #tpu.pipeline_mode<synchronous>, transform_indices = @transform_4, window_bounds = array<i64: 32, 32>}, {pipeline_mode = #tpu.pipeline_mode<synchronous>, transform_indices = @transform_5, window_bounds = array<i64: 1, 32>}, {pipeline_mode = #tpu.pipeline_mode<synchronous>, transform_indices = @transform_6, window_bounds = array<i64: 32, 32>}, {pipeline_mode = #tpu.pipeline_mode<synchronous>, transform_indices = @transform_7, window_bounds = array<i64: 1, 32>}, {pipeline_mode = #tpu.pipeline_mode<synchronous>, transform_indices = @transform_8, window_bounds = array<i64: 96, 32>}, {pipeline_mode = #tpu.pipeline_mode<synchronous>, transform_indices = @transform_9, window_bounds = array<i64: 1, 32>}, {pipeline_mode = #tpu.pipeline_mode<synchronous>, transform_indices = @transform_10, window_bounds = array<i64: 32, 8>}, {pipeline_mode = #tpu.pipeline_mode<synchronous>, transform_indices = @transform_11, window_bounds = array<i64: 1, 8>}, {pipeline_mode = #tpu.pipeline_mode<synchronous>, transform_indices = @transform_12, window_bounds = array<i64: 2, 8>}, {pipeline_mode = #tpu.pipeline_mode<synchronous>, transform_indices = @transform_13, window_bounds = array<i64: 2, 32>}]} {
    %c0 = arith.constant 0 : index
    %c0_0 = arith.constant 0 : index
    %c0_1 = arith.constant 0 : index
    %0 = vector.load %arg1[%c0, %c0_0, %c0_1] : memref<2x16x16xf32, #tpu.memory_space<vmem>>, vector<1x16x16xf32>
    %1 = vector.shape_cast %0 : vector<1x16x16xf32> to vector<16x16xf32>
    %cst = arith.constant dense<0.000000e+00> : vector<16xf32>
    %2 = vector.multi_reduction <add>, %1, %cst [1] : vector<16x16xf32> to vector<16xf32>
    %3 = vector.shape_cast %2 : vector<16xf32> to vector<16x1xf32>
    %cst_2 = arith.constant dense<0.000000e+00> : vector<16xf32>
    %4 = vector.multi_reduction <add>, %1, %cst_2 [0] : vector<16x16xf32> to vector<16xf32>
    %5 = vector.shape_cast %4 : vector<16xf32> to vector<16x1xf32>
    %cst_3 = arith.constant 1.000000e+00 : f32
    %6 = vector.broadcast %cst_3 : f32 to vector<16x1xf32>
    %7 = arith.addf %3, %6 : vector<16x1xf32>
    %8 = tpu.reciprocal %7 {approx = true} : vector<16x1xf32> -> vector<16x1xf32>
    %9 = arith.addf %3, %5 : vector<16x1xf32>
    %cst_4 = arith.constant 0.000000e+00 : f32
    %10 = vector.broadcast %cst_4 : f32 to vector<16x1xf32>
    %11 = arith.cmpf one, %9, %10 : vector<16x1xf32>
    %c1 = arith.constant 1 : index
    %c0_5 = arith.constant 0 : index
    %c0_6 = arith.constant 0 : index
    %12 = vector.load %arg1[%c1, %c0_5, %c0_6] : memref<2x16x16xf32, #tpu.memory_space<vmem>>, vector<1x16x16xf32>
    %13 = vector.shape_cast %12 : vector<1x16x16xf32> to vector<16x16xf32>
    %cst_7 = arith.constant dense<0.000000e+00> : vector<16xf32>
    %14 = vector.multi_reduction <add>, %13, %cst_7 [1] : vector<16x16xf32> to vector<16xf32>
    %15 = vector.shape_cast %14 : vector<16xf32> to vector<16x1xf32>
    %cst_8 = arith.constant dense<0.000000e+00> : vector<16xf32>
    %16 = vector.multi_reduction <add>, %13, %cst_8 [0] : vector<16x16xf32> to vector<16xf32>
    %17 = vector.shape_cast %16 : vector<16xf32> to vector<16x1xf32>
    %cst_9 = arith.constant 1.000000e+00 : f32
    %18 = vector.broadcast %cst_9 : f32 to vector<16x1xf32>
    %19 = arith.addf %15, %18 : vector<16x1xf32>
    %20 = tpu.reciprocal %19 {approx = true} : vector<16x1xf32> -> vector<16x1xf32>
    %21 = arith.addf %15, %17 : vector<16x1xf32>
    %cst_10 = arith.constant 0.000000e+00 : f32
    %22 = vector.broadcast %cst_10 : f32 to vector<16x1xf32>
    %23 = arith.cmpf one, %21, %22 : vector<16x1xf32>
    %24 = tpu.concatenate %8, %20 in 0 : vector<16x1xf32>, vector<16x1xf32> -> vector<32x1xf32>
    %c0_11 = arith.constant 0 : index
    %c0_12 = arith.constant 0 : index
    %25 = vector.load %arg2[%c0_11, %c0_12] : memref<32x32xf32, #tpu.memory_space<vmem>>, vector<32x32xf32>
    %c0_13 = arith.constant 0 : index
    %c0_14 = arith.constant 0 : index
    %26 = vector.load %arg5[%c0_13, %c0_14] : memref<32x32xf32, #tpu.memory_space<vmem>>, vector<32x32xf32>
    %c0_15 = arith.constant 0 : index
    %c0_16 = arith.constant 0 : index
    %27 = vector.load %arg6[%c0_15, %c0_16] : memref<1x32xf32, #tpu.memory_space<vmem>>, vector<1x32xf32>
    %cst_17 = arith.constant 2.000000e+00 : f32
    %28 = vector.broadcast %cst_17 : f32 to vector<1x32xf32>
    %29 = arith.mulf %28, %27 : vector<1x32xf32>
    %30 = vector.extract_strided_slice %25 {offsets = [0, 0], sizes = [16, 32], strides = [1, 1]} : vector<32x32xf32> to vector<16x32xf32>
    %cst_18 = arith.constant dense<0.000000e+00> : vector<16x32xf32>
    %31 = tpu.matmul %1, %30, %cst_18 {dimension_numbers = #tpu.dot_dimension_numbers<[1], [0], [0], [1], [0, 0, 1, 1], [], []>} : vector<16x16xf32>, vector<16x32xf32>, vector<16x32xf32> -> vector<16x32xf32>
    %32 = arith.addf %31, %30 : vector<16x32xf32>
    %33 = vector.extract_strided_slice %25 {offsets = [16, 0], sizes = [16, 32], strides = [1, 1]} : vector<32x32xf32> to vector<16x32xf32>
    %cst_19 = arith.constant dense<0.000000e+00> : vector<16x32xf32>
    %34 = tpu.matmul %13, %33, %cst_19 {dimension_numbers = #tpu.dot_dimension_numbers<[1], [0], [0], [1], [0, 0, 1, 1], [], []>} : vector<16x16xf32>, vector<16x32xf32>, vector<16x32xf32> -> vector<16x32xf32>
    %35 = arith.addf %34, %33 : vector<16x32xf32>
    %36 = tpu.concatenate %32, %35 in 0 : vector<16x32xf32>, vector<16x32xf32> -> vector<32x32xf32>
    %cst_20 = arith.constant dense<0.000000e+00> : vector<32x32xf32>
    %37 = tpu.matmul %36, %26, %cst_20 {dimension_numbers = #tpu.dot_dimension_numbers<[1], [0], [0], [1], [0, 0, 1, 1], [], []>} : vector<32x32xf32>, vector<32x32xf32>, vector<32x32xf32> -> vector<32x32xf32>
    %38 = vector.broadcast %29 : vector<1x32xf32> to vector<32x32xf32>
    %39 = arith.addf %37, %38 : vector<32x32xf32>
    %40 = vector.broadcast %24 : vector<32x1xf32> to vector<32x32xf32>
    %41 = arith.mulf %39, %40 : vector<32x32xf32>
    %cst_21 = arith.constant 0.000000e+00 : f32
    %42 = vector.broadcast %cst_21 : f32 to vector<32x32xf32>
    %43 = arith.maximumf %41, %42 : vector<32x32xf32>
    %c0_22 = arith.constant 0 : index
    %c0_23 = arith.constant 0 : index
    %44 = vector.load %arg7[%c0_22, %c0_23] : memref<32x32xf32, #tpu.memory_space<vmem>>, vector<32x32xf32>
    %c0_24 = arith.constant 0 : index
    %c0_25 = arith.constant 0 : index
    %45 = vector.load %arg8[%c0_24, %c0_25] : memref<1x32xf32, #tpu.memory_space<vmem>>, vector<1x32xf32>
    %cst_26 = arith.constant 2.000000e+00 : f32
    %46 = vector.broadcast %cst_26 : f32 to vector<1x32xf32>
    %47 = arith.mulf %46, %45 : vector<1x32xf32>
    %48 = vector.extract_strided_slice %43 {offsets = [0, 0], sizes = [16, 32], strides = [1, 1]} : vector<32x32xf32> to vector<16x32xf32>
    %cst_27 = arith.constant dense<0.000000e+00> : vector<16x32xf32>
    %49 = tpu.matmul %1, %48, %cst_27 {dimension_numbers = #tpu.dot_dimension_numbers<[1], [0], [0], [1], [0, 0, 1, 1], [], []>} : vector<16x16xf32>, vector<16x32xf32>, vector<16x32xf32> -> vector<16x32xf32>
    %50 = arith.addf %49, %48 : vector<16x32xf32>
    %51 = vector.extract_strided_slice %43 {offsets = [16, 0], sizes = [16, 32], strides = [1, 1]} : vector<32x32xf32> to vector<16x32xf32>
    %cst_28 = arith.constant dense<0.000000e+00> : vector<16x32xf32>
    %52 = tpu.matmul %13, %51, %cst_28 {dimension_numbers = #tpu.dot_dimension_numbers<[1], [0], [0], [1], [0, 0, 1, 1], [], []>} : vector<16x16xf32>, vector<16x32xf32>, vector<16x32xf32> -> vector<16x32xf32>
    %53 = arith.addf %52, %51 : vector<16x32xf32>
    %54 = tpu.concatenate %50, %53 in 0 : vector<16x32xf32>, vector<16x32xf32> -> vector<32x32xf32>
    %cst_29 = arith.constant dense<0.000000e+00> : vector<32x32xf32>
    %55 = tpu.matmul %54, %44, %cst_29 {dimension_numbers = #tpu.dot_dimension_numbers<[1], [0], [0], [1], [0, 0, 1, 1], [], []>} : vector<32x32xf32>, vector<32x32xf32>, vector<32x32xf32> -> vector<32x32xf32>
    %56 = vector.broadcast %47 : vector<1x32xf32> to vector<32x32xf32>
    %57 = arith.addf %55, %56 : vector<32x32xf32>
    %58 = vector.broadcast %24 : vector<32x1xf32> to vector<32x32xf32>
    %59 = arith.mulf %57, %58 : vector<32x32xf32>
    %cst_30 = arith.constant 0.000000e+00 : f32
    %60 = vector.broadcast %cst_30 : f32 to vector<32x32xf32>
    %61 = arith.maximumf %59, %60 : vector<32x32xf32>
    %c0_31 = arith.constant 0 : index
    %c0_32 = arith.constant 0 : index
    %62 = vector.load %arg3[%c0_31, %c0_32] : memref<32x1xf32, #tpu.memory_space<vmem>>, vector<32x1xf32>
    %c0_33 = arith.constant 0 : index
    %c0_34 = arith.constant 0 : index
    %63 = vector.load %arg4[%c0_33, %c0_34] : memref<32x1xf32, #tpu.memory_space<vmem>>, vector<32x1xf32>
    %64 = vector.extract_strided_slice %61 {offsets = [0, 0], sizes = [16, 32], strides = [1, 1]} : vector<32x32xf32> to vector<16x32xf32>
    %65 = vector.extract_strided_slice %62 {offsets = [0, 0], sizes = [16, 1], strides = [1, 1]} : vector<32x1xf32> to vector<16x1xf32>
    %cst_35 = arith.constant 0.000000e+00 : f32
    %66 = vector.broadcast %cst_35 : f32 to vector<16x1xf32>
    %67 = arith.cmpf ogt, %65, %66 : vector<16x1xf32>
    %68 = vector.extract_strided_slice %63 {offsets = [0, 0], sizes = [16, 1], strides = [1, 1]} : vector<32x1xf32> to vector<16x1xf32>
    %cst_36 = arith.constant 0.000000e+00 : f32
    %69 = vector.broadcast %cst_36 : f32 to vector<16x1xf32>
    %70 = arith.cmpf ogt, %68, %69 : vector<16x1xf32>
    %cst_37 = arith.constant -9.99999995E+11 : f32
    %71 = vector.shape_cast %11 : vector<16x1xi1> to vector<16x1xi1>
    %72 = vector.broadcast %71 : vector<16x1xi1> to vector<16x32xi1>
    %73 = vector.broadcast %cst_37 : f32 to vector<16x32xf32>
    %74 = arith.select %72, %64, %73 : vector<16x32xi1>, vector<16x32xf32>
    %cst_38 = arith.constant dense<0xFF800000> : vector<32xf32>
    %75 = vector.multi_reduction <maximumf>, %74, %cst_38 [0] : vector<16x32xf32> to vector<32xf32>
    %76 = vector.shape_cast %75 : vector<32xf32> to vector<1x32xf32>
    %cst_39 = arith.constant -9.99999995E+11 : f32
    %77 = vector.shape_cast %67 : vector<16x1xi1> to vector<16x1xi1>
    %78 = vector.broadcast %77 : vector<16x1xi1> to vector<16x32xi1>
    %79 = vector.broadcast %cst_39 : f32 to vector<16x32xf32>
    %80 = arith.select %78, %64, %79 : vector<16x32xi1>, vector<16x32xf32>
    %cst_40 = arith.constant dense<0xFF800000> : vector<32xf32>
    %81 = vector.multi_reduction <maximumf>, %80, %cst_40 [0] : vector<16x32xf32> to vector<32xf32>
    %82 = vector.shape_cast %81 : vector<32xf32> to vector<1x32xf32>
    %cst_41 = arith.constant -9.99999995E+11 : f32
    %83 = vector.shape_cast %70 : vector<16x1xi1> to vector<16x1xi1>
    %84 = vector.broadcast %83 : vector<16x1xi1> to vector<16x32xi1>
    %85 = vector.broadcast %cst_41 : f32 to vector<16x32xf32>
    %86 = arith.select %84, %64, %85 : vector<16x32xi1>, vector<16x32xf32>
    %cst_42 = arith.constant dense<0xFF800000> : vector<32xf32>
    %87 = vector.multi_reduction <maximumf>, %86, %cst_42 [0] : vector<16x32xf32> to vector<32xf32>
    %88 = vector.shape_cast %87 : vector<32xf32> to vector<1x32xf32>
    %89 = vector.extract_strided_slice %61 {offsets = [16, 0], sizes = [16, 32], strides = [1, 1]} : vector<32x32xf32> to vector<16x32xf32>
    %90 = vector.extract_strided_slice %62 {offsets = [16, 0], sizes = [16, 1], strides = [1, 1]} : vector<32x1xf32> to vector<16x1xf32>
    %cst_43 = arith.constant 0.000000e+00 : f32
    %91 = vector.broadcast %cst_43 : f32 to vector<16x1xf32>
    %92 = arith.cmpf ogt, %90, %91 : vector<16x1xf32>
    %93 = vector.extract_strided_slice %63 {offsets = [16, 0], sizes = [16, 1], strides = [1, 1]} : vector<32x1xf32> to vector<16x1xf32>
    %cst_44 = arith.constant 0.000000e+00 : f32
    %94 = vector.broadcast %cst_44 : f32 to vector<16x1xf32>
    %95 = arith.cmpf ogt, %93, %94 : vector<16x1xf32>
    %cst_45 = arith.constant -9.99999995E+11 : f32
    %96 = vector.shape_cast %23 : vector<16x1xi1> to vector<16x1xi1>
    %97 = vector.broadcast %96 : vector<16x1xi1> to vector<16x32xi1>
    %98 = vector.broadcast %cst_45 : f32 to vector<16x32xf32>
    %99 = arith.select %97, %89, %98 : vector<16x32xi1>, vector<16x32xf32>
    %cst_46 = arith.constant dense<0xFF800000> : vector<32xf32>
    %100 = vector.multi_reduction <maximumf>, %99, %cst_46 [0] : vector<16x32xf32> to vector<32xf32>
    %101 = vector.shape_cast %100 : vector<32xf32> to vector<1x32xf32>
    %cst_47 = arith.constant -9.99999995E+11 : f32
    %102 = vector.shape_cast %92 : vector<16x1xi1> to vector<16x1xi1>
    %103 = vector.broadcast %102 : vector<16x1xi1> to vector<16x32xi1>
    %104 = vector.broadcast %cst_47 : f32 to vector<16x32xf32>
    %105 = arith.select %103, %89, %104 : vector<16x32xi1>, vector<16x32xf32>
    %cst_48 = arith.constant dense<0xFF800000> : vector<32xf32>
    %106 = vector.multi_reduction <maximumf>, %105, %cst_48 [0] : vector<16x32xf32> to vector<32xf32>
    %107 = vector.shape_cast %106 : vector<32xf32> to vector<1x32xf32>
    %cst_49 = arith.constant -9.99999995E+11 : f32
    %108 = vector.shape_cast %95 : vector<16x1xi1> to vector<16x1xi1>
    %109 = vector.broadcast %108 : vector<16x1xi1> to vector<16x32xi1>
    %110 = vector.broadcast %cst_49 : f32 to vector<16x32xf32>
    %111 = arith.select %109, %89, %110 : vector<16x32xi1>, vector<16x32xf32>
    %cst_50 = arith.constant dense<0xFF800000> : vector<32xf32>
    %112 = vector.multi_reduction <maximumf>, %111, %cst_50 [0] : vector<16x32xf32> to vector<32xf32>
    %113 = vector.shape_cast %112 : vector<32xf32> to vector<1x32xf32>
    %114 = tpu.concatenate %76, %101 in 0 : vector<1x32xf32>, vector<1x32xf32> -> vector<2x32xf32>
    %115 = tpu.concatenate %82, %107 in 0 : vector<1x32xf32>, vector<1x32xf32> -> vector<2x32xf32>
    %116 = tpu.concatenate %88, %113 in 0 : vector<1x32xf32>, vector<1x32xf32> -> vector<2x32xf32>
    %c0_51 = arith.constant 0 : index
    %c0_52 = arith.constant 0 : index
    %117 = vector.load %arg9[%c0_51, %c0_52] : memref<96x32xf32, #tpu.memory_space<vmem>>, vector<96x32xf32>
    %118 = vector.extract_strided_slice %117 {offsets = [0, 0], sizes = [32, 32], strides = [1, 1]} : vector<96x32xf32> to vector<32x32xf32>
    %cst_53 = arith.constant dense<0.000000e+00> : vector<2x32xf32>
    %119 = tpu.matmul %114, %118, %cst_53 {dimension_numbers = #tpu.dot_dimension_numbers<[1], [0], [0], [1], [0, 0, 1, 1], [], []>} : vector<2x32xf32>, vector<32x32xf32>, vector<2x32xf32> -> vector<2x32xf32>
    %120 = vector.extract_strided_slice %117 {offsets = [32, 0], sizes = [32, 32], strides = [1, 1]} : vector<96x32xf32> to vector<32x32xf32>
    %cst_54 = arith.constant dense<0.000000e+00> : vector<2x32xf32>
    %121 = tpu.matmul %115, %120, %cst_54 {dimension_numbers = #tpu.dot_dimension_numbers<[1], [0], [0], [1], [0, 0, 1, 1], [], []>} : vector<2x32xf32>, vector<32x32xf32>, vector<2x32xf32> -> vector<2x32xf32>
    %122 = arith.addf %119, %121 : vector<2x32xf32>
    %123 = vector.extract_strided_slice %117 {offsets = [64, 0], sizes = [32, 32], strides = [1, 1]} : vector<96x32xf32> to vector<32x32xf32>
    %cst_55 = arith.constant dense<0.000000e+00> : vector<2x32xf32>
    %124 = tpu.matmul %116, %123, %cst_55 {dimension_numbers = #tpu.dot_dimension_numbers<[1], [0], [0], [1], [0, 0, 1, 1], [], []>} : vector<2x32xf32>, vector<32x32xf32>, vector<2x32xf32> -> vector<2x32xf32>
    %125 = arith.addf %122, %124 : vector<2x32xf32>
    %c0_56 = arith.constant 0 : index
    %c0_57 = arith.constant 0 : index
    %126 = vector.load %arg10[%c0_56, %c0_57] : memref<1x32xf32, #tpu.memory_space<vmem>>, vector<1x32xf32>
    %127 = vector.broadcast %126 : vector<1x32xf32> to vector<2x32xf32>
    %128 = arith.addf %125, %127 : vector<2x32xf32>
    %cst_58 = arith.constant 0.000000e+00 : f32
    %129 = vector.broadcast %cst_58 : f32 to vector<2x32xf32>
    %130 = arith.maximumf %128, %129 : vector<2x32xf32>
    %c0_59 = arith.constant 0 : index
    %c0_60 = arith.constant 0 : index
    %131 = vector.load %arg11[%c0_59, %c0_60] : memref<32x8xf32, #tpu.memory_space<vmem>>, vector<32x8xf32>
    %cst_61 = arith.constant dense<0.000000e+00> : vector<2x8xf32>
    %132 = tpu.matmul %130, %131, %cst_61 {dimension_numbers = #tpu.dot_dimension_numbers<[1], [0], [0], [1], [0, 0, 1, 1], [], []>} : vector<2x32xf32>, vector<32x8xf32>, vector<2x8xf32> -> vector<2x8xf32>
    %c0_62 = arith.constant 0 : index
    %c0_63 = arith.constant 0 : index
    %133 = vector.load %arg12[%c0_62, %c0_63] : memref<1x8xf32, #tpu.memory_space<vmem>>, vector<1x8xf32>
    %134 = vector.broadcast %133 : vector<1x8xf32> to vector<2x8xf32>
    %135 = arith.addf %132, %134 : vector<2x8xf32>
    %c0_64 = arith.constant 0 : index
    %c0_65 = arith.constant 0 : index
    %136 = vector.load %arg13[%c0_64, %c0_65] : memref<2x8xf32, #tpu.memory_space<vmem>>, vector<2x8xf32>
    tpu.vector_store %arg13[%c0_64, %c0_65], %135 {strides = array<i32>} : memref<2x8xf32, #tpu.memory_space<vmem>>, vector<2x8xf32>,
    %c0_66 = arith.constant 0 : index
    %c0_67 = arith.constant 0 : index
    %137 = vector.load %arg14[%c0_66, %c0_67] : memref<2x32xf32, #tpu.memory_space<vmem>>, vector<2x32xf32>
    tpu.vector_store %arg14[%c0_66, %c0_67], %114 {strides = array<i32>} : memref<2x32xf32, #tpu.memory_space<vmem>>, vector<2x32xf32>,
    return
  }
  func.func @transform_0(%arg0: i32) -> (i32, i32, i32) {
    %c0_i32 = arith.constant 0 : i32
    %c0_i32_0 = arith.constant 0 : i32
    %c0_i32_1 = arith.constant 0 : i32
    %c0_i32_2 = arith.constant 0 : i32
    return %c0_i32, %c0_i32_0, %c0_i32_1 : i32, i32, i32
  }
  func.func @transform_1(%arg0: i32) -> (i32, i32) {
    %c0_i32 = arith.constant 0 : i32
    %c0_i32_0 = arith.constant 0 : i32
    %c0_i32_1 = arith.constant 0 : i32
    return %c0_i32, %c0_i32_0 : i32, i32
  }
  func.func @transform_2(%arg0: i32) -> (i32, i32) {
    %c0_i32 = arith.constant 0 : i32
    %c0_i32_0 = arith.constant 0 : i32
    %c0_i32_1 = arith.constant 0 : i32
    return %c0_i32, %c0_i32_0 : i32, i32
  }
  func.func @transform_3(%arg0: i32) -> (i32, i32) {
    %c0_i32 = arith.constant 0 : i32
    %c0_i32_0 = arith.constant 0 : i32
    %c0_i32_1 = arith.constant 0 : i32
    return %c0_i32, %c0_i32_0 : i32, i32
  }
  func.func @transform_4(%arg0: i32) -> (i32, i32) {
    %c0_i32 = arith.constant 0 : i32
    %c0_i32_0 = arith.constant 0 : i32
    %c0_i32_1 = arith.constant 0 : i32
    return %c0_i32, %c0_i32_0 : i32, i32
  }
  func.func @transform_5(%arg0: i32) -> (i32, i32) {
    %c0_i32 = arith.constant 0 : i32
    %c0_i32_0 = arith.constant 0 : i32
    %c0_i32_1 = arith.constant 0 : i32
    return %c0_i32, %c0_i32_0 : i32, i32
  }
  func.func @transform_6(%arg0: i32) -> (i32, i32) {
    %c0_i32 = arith.constant 0 : i32
    %c0_i32_0 = arith.constant 0 : i32
    %c0_i32_1 = arith.constant 0 : i32
    return %c0_i32, %c0_i32_0 : i32, i32
  }
  func.func @transform_7(%arg0: i32) -> (i32, i32) {
    %c0_i32 = arith.constant 0 : i32
    %c0_i32_0 = arith.constant 0 : i32
    %c0_i32_1 = arith.constant 0 : i32
    return %c0_i32, %c0_i32_0 : i32, i32
  }
  func.func @transform_8(%arg0: i32) -> (i32, i32) {
    %c0_i32 = arith.constant 0 : i32
    %c0_i32_0 = arith.constant 0 : i32
    %c0_i32_1 = arith.constant 0 : i32
    return %c0_i32, %c0_i32_0 : i32, i32
  }
  func.func @transform_9(%arg0: i32) -> (i32, i32) {
    %c0_i32 = arith.constant 0 : i32
    %c0_i32_0 = arith.constant 0 : i32
    %c0_i32_1 = arith.constant 0 : i32
    return %c0_i32, %c0_i32_0 : i32, i32
  }
  func.func @transform_10(%arg0: i32) -> (i32, i32) {
    %c0_i32 = arith.constant 0 : i32
    %c0_i32_0 = arith.constant 0 : i32
    %c0_i32_1 = arith.constant 0 : i32
    return %c0_i32, %c0_i32_0 : i32, i32
  }
  func.func @transform_11(%arg0: i32) -> (i32, i32) {
    %c0_i32 = arith.constant 0 : i32
    %c0_i32_0 = arith.constant 0 : i32
    %c0_i32_1 = arith.constant 0 : i32
    return %c0_i32, %c0_i32_0 : i32, i32
  }
  func.func @transform_12(%arg0: i32) -> (i32, i32) {
    %c0_i32 = arith.constant 0 : i32
    %c0_i32_0 = arith.constant 0 : i32
    %c0_i32_1 = arith.constant 0 : i32
    return %c0_i32, %c0_i32_0 : i32, i32
  }
  func.func @transform_13(%arg0: i32) -> (i32, i32) {
    %c0_i32 = arith.constant 0 : i32
    %c0_i32_0 = arith.constant 0 : i32
    %c0_i32_1 = arith.constant 0 : i32
    return %c0_i32, %c0_i32_0 : i32, i32
  }
}

</mosaic_0001>

<llo_original>
// kernel: gcn_classifier_forward.1
$region0: #{gcn_classifier_forward.1}
  #allocation0 [shape = 'u32[]', space=smem, size = 0x4, offset = 0x4, fixed_abs, tag = 'smem constant byte address 0x4 - core index']
  #allocation1 [shape = 'u32[72,128]{1,0:T(1,128)}', space=vmem, size = 0x9000, scoped, tag = 'internal scratch']
  %s0 = inlined_call_operand.vmem [shape: f32[2,16,16], index: 0, kind: input, shape index: {}]
  %s1 = inlined_call_operand.vmem [shape: f32[32,32], index: 1, kind: input, shape index: {}]
  %s2 = inlined_call_operand.vmem [shape: f32[32,1], index: 2, kind: input, shape index: {}]
  %s3 = inlined_call_operand.vmem [shape: f32[32,1], index: 3, kind: input, shape index: {}]
  %s4 = inlined_call_operand.vmem [shape: f32[32,32], index: 4, kind: input, shape index: {}]
  %s5 = inlined_call_operand.vmem [shape: f32[1,32], index: 5, kind: input, shape index: {}]
  %s6 = inlined_call_operand.vmem [shape: f32[32,32], index: 6, kind: input, shape index: {}]
  %s7 = inlined_call_operand.vmem [shape: f32[1,32], index: 7, kind: input, shape index: {}]
  %s8 = inlined_call_operand.vmem [shape: f32[96,32], index: 8, kind: input, shape index: {}]
  %s9 = inlined_call_operand.vmem [shape: f32[1,32], index: 9, kind: input, shape index: {}]
  %s10 = inlined_call_operand.vmem [shape: f32[32,8], index: 10, kind: input, shape index: {}]
  %s11 = inlined_call_operand.vmem [shape: f32[1,8], index: 11, kind: input, shape index: {}]
  %s12 = inlined_call_operand.hbm [shape: f32[2,8], index: 12, kind: output, shape index: {0}]
  %s13 = inlined_call_operand.hbm [shape: f32[2,32], index: 13, kind: output, shape index: {1}]
  %14 = xla_tuple %s12, %s13
  %s15 = sld [smem:[#allocation0]]
  $region66: #{gcn_classifier_forward.1} parent=0
    _
  %s17 = ssub.s32 1, %s15
  %s18 = scalar_select 0, %s17, %s15
  $region1: #{gcn_classifier_forward.1} parent=0
    #allocation2 [shape = 'u8[1024]{0}', space=vmem, size = 0x400, scoped, tag = 'output window, operand 0, single buffered']
    #allocation3 [shape = 's32[1]{0}', space=sflag, size = 0x4, scoped, tag = 'scoped memory for gcn_classifier_forward.1']
    #allocation4 [shape = 'u8[1024]{0}', space=vmem, size = 0x400, scoped, tag = 'output window, operand 1, single buffered']
    #allocation5 [shape = 's32[1]{0}', space=sflag, size = 0x4, scoped, tag = 'scoped memory for gcn_classifier_forward.1']
    %19 = vsyncpa [#allocation3], 0
    %20 = vsyncpa [#allocation5], 0
    // Predicated region
    $region2: #{gcn_classifier_forward.1} parent=1 // pred_check
      _
    $region3: #{gcn_classifier_forward.1} parent=1 // pred_check_branch
      %22 = sbr.rel (0) target = $region5
    $region4: #{gcn_classifier_forward.1} parent=1 // pred_region
      _
    $region5: #{gcn_classifier_forward.1} parent=1 // pred_fallthru
      _
    // Predicated region
    $region6: #{gcn_classifier_forward.1} parent=1 // pred_check
      _
    $region7: #{gcn_classifier_forward.1} parent=1 // pred_check_branch
      %24 = sbr.rel (0) target = $region9
    $region8: #{gcn_classifier_forward.1} parent=1 // pred_region
      _
    $region9: #{gcn_classifier_forward.1} parent=1 // pred_fallthru
      _
    // Predicated region
    $region10: #{gcn_classifier_forward.1} parent=1 // pred_check
      _
    $region11: #{gcn_classifier_forward.1} parent=1 // pred_check_branch
      %26 = sbr.rel (0) target = $region13
    $region12: #{gcn_classifier_forward.1} parent=1 // pred_region
      _
    $region13: #{gcn_classifier_forward.1} parent=1 // pred_fallthru
      _
    // Predicated region
    $region14: #{gcn_classifier_forward.1} parent=1 // pred_check
      _
    $region15: #{gcn_classifier_forward.1} parent=1 // pred_check_branch
      %28 = sbr.rel (0) target = $region17
    $region16: #{gcn_classifier_forward.1} parent=1 // pred_region
      _
    $region17: #{gcn_classifier_forward.1} parent=1 // pred_fallthru
      _
    // Predicated region
    $region18: #{gcn_classifier_forward.1} parent=1 // pred_check
      _
    $region19: #{gcn_classifier_forward.1} parent=1 // pred_check_branch
      %30 = sbr.rel (0) target = $region21
    $region20: #{gcn_classifier_forward.1} parent=1 // pred_region
      _
    $region21: #{gcn_classifier_forward.1} parent=1 // pred_fallthru
      _
    // Predicated region
    $region22: #{gcn_classifier_forward.1} parent=1 // pred_check
      _
    $region23: #{gcn_classifier_forward.1} parent=1 // pred_check_branch
      %32 = sbr.rel (0) target = $region25
    $region24: #{gcn_classifier_forward.1} parent=1 // pred_region
      _
    $region25: #{gcn_classifier_forward.1} parent=1 // pred_fallthru
      _
    // Predicated region
    $region26: #{gcn_classifier_forward.1} parent=1 // pred_check
      _
    $region27: #{gcn_classifier_forward.1} parent=1 // pred_check_branch
      %34 = sbr.rel (0) target = $region29
    $region28: #{gcn_classifier_forward.1} parent=1 // pred_region
      _
    $region29: #{gcn_classifier_forward.1} parent=1 // pred_fallthru
      _
    // Predicated region
    $region30: #{gcn_classifier_forward.1} parent=1 // pred_check
      _
    $region31: #{gcn_classifier_forward.1} parent=1 // pred_check_branch
      %36 = sbr.rel (0) target = $region33
    $region32: #{gcn_classifier_forward.1} parent=1 // pred_region
      _
    $region33: #{gcn_classifier_forward.1} parent=1 // pred_fallthru
      _
    // Predicated region
    $region34: #{gcn_classifier_forward.1} parent=1 // pred_check
      _
    $region35: #{gcn_classifier_forward.1} parent=1 // pred_check_branch
      %38 = sbr.rel (0) target = $region37
    $region36: #{gcn_classifier_forward.1} parent=1 // pred_region
      _
    $region37: #{gcn_classifier_forward.1} parent=1 // pred_fallthru
      _
    // Predicated region
    $region38: #{gcn_classifier_forward.1} parent=1 // pred_check
      _
    $region39: #{gcn_classifier_forward.1} parent=1 // pred_check_branch
      %40 = sbr.rel (0) target = $region41
    $region40: #{gcn_classifier_forward.1} parent=1 // pred_region
      _
    $region41: #{gcn_classifier_forward.1} parent=1 // pred_fallthru
      _
    // Predicated region
    $region42: #{gcn_classifier_forward.1} parent=1 // pred_check
      _
    $region43: #{gcn_classifier_forward.1} parent=1 // pred_check_branch
      %42 = sbr.rel (0) target = $region45
    $region44: #{gcn_classifier_forward.1} parent=1 // pred_region
      _
    $region45: #{gcn_classifier_forward.1} parent=1 // pred_fallthru
      _
    // Predicated region
    $region46: #{gcn_classifier_forward.1} parent=1 // pred_check
      _
    $region47: #{gcn_classifier_forward.1} parent=1 // pred_check_branch
      %44 = sbr.rel (0) target = $region49
    $region48: #{gcn_classifier_forward.1} parent=1 // pred_region
      _
    $region49: #{gcn_classifier_forward.1} parent=1 // pred_fallthru
      _
    %v45 = vld [vmem:[%s0] sm:$0xff]
    %v46 = vld [vmem:[%s0 + $0x8] sm:$0xff]
    %vm47 = vcmask 130048
    %v48 = vsel %vm47, %v45, 0.0
    %49 = vadd.xlane.f32.xlu0 %v48
    %v50 = vpop.xlane.xlu0 %49
    %v51 = vsel %vm47, %v46, 0.0
    %52 = vadd.xlane.f32.xlu0 %v51
    %v53 = vpop.xlane.xlu0 %52
    %v54 = vadd.f32 %v48, %v51
    %v55 = vrot.slane %v54, 4
    %v56 = vadd.f32 %v54, %v55
    %v57 = vrot.slane %v56, 2
    %v58 = vadd.f32 %v56, %v57
    %v59 = vrot.slane %v58, 1
    %v60 = vadd.f32 %v58, %v59
    %v61 = vlaneseq
    %v62 = vshrl.u32 %v61, 7
    %64 = vset.pattern.permute.xlu0 %v62
    %65 = vperm.xlu0 %64, %v60
    %v66 = vpop.permute.xlu0 %65
    %v67 = vlaneseq
    %v68 = vshrl.u32 %v67, 7
    %v69 = vadd.s32 %v68, 8
    %70 = vset.pattern.permute.xlu0 %v69
    %71 = vperm.xlu0 %70, %v60
    %v72 = vpop.permute.xlu0 %71
    %v73 = vadd.f32 %v50, 1.0
    %v74 = vadd.f32 %v53, 1.0
    %v75 = vrcp.pop %v73
    %v76 = vrcp.pop %v74
    %v77 = vadd.f32 %v50, %v66
    %v78 = vadd.f32 %v53, %v72
    %vm79 = vcmp.ne.f32.partialorder %v77, 0.0
    %vm80 = vcmp.ne.f32.partialorder %v78, 0.0
    %s81 = scalar_lea.vmem %s0, 16
    %v82 = vld [vmem:[%s81] sm:$0xff]
    %v83 = vld [vmem:[%s81 + $0x8] sm:$0xff]
    %v84 = vsel %vm47, %v82, 0.0
    %85 = vadd.xlane.f32.xlu0 %v84
    %v86 = vpop.xlane.xlu0 %85
    %v87 = vsel %vm47, %v83, 0.0
    %88 = vadd.xlane.f32.xlu0 %v87
    %v89 = vpop.xlane.xlu0 %88
    %v90 = vadd.f32 %v84, %v87
    %v91 = vrot.slane %v90, 4
    %v92 = vadd.f32 %v90, %v91
    %v93 = vrot.slane %v92, 2
    %v94 = vadd.f32 %v92, %v93
    %v95 = vrot.slane %v94, 1
    %v96 = vadd.f32 %v94, %v95
    %v97 = vlaneseq
    %v98 = vshrl.u32 %v97, 7
    %100 = vset.pattern.permute.xlu0 %v98
    %101 = vperm.xlu0 %100, %v96
    %v102 = vpop.permute.xlu0 %101
    %v103 = vlaneseq
    %v104 = vshrl.u32 %v103, 7
    %v105 = vadd.s32 %v104, 8
    %106 = vset.pattern.permute.xlu0 %v105
    %107 = vperm.xlu0 %106, %v96
    %v108 = vpop.permute.xlu0 %107
    %v109 = vadd.f32 %v86, 1.0
    %v110 = vadd.f32 %v89, 1.0
    %v111 = vrcp.pop %v109
    %v112 = vrcp.pop %v110
    %v113 = vadd.f32 %v86, %v102
    %v114 = vadd.f32 %v89, %v108
    %vm115 = vcmp.ne.f32.partialorder %v113, 0.0
    %vm116 = vcmp.ne.f32.partialorder %v114, 0.0
    %v117 = vld [vmem:[%s1] sm:$0xff]
    %v118 = vld [vmem:[%s1 + $0x8] sm:$0xff]
    %v119 = vld [vmem:[%s1 + $0x10] sm:$0xff]
    %v120 = vld [vmem:[%s1 + $0x18] sm:$0xff]
    %v121 = vld [vmem:[%s4] sm:$0xff]
    %v122 = vld [vmem:[%s4 + $0x8] sm:$0xff]
    %v123 = vld [vmem:[%s4 + $0x10] sm:$0xff]
    %v124 = vld [vmem:[%s4 + $0x18] sm:$0xff]
    %v125 = vld [vmem:[%s5] sm:$0x1]
    %v126 = vmul.f32 %v125, 2.0
    %v128 = vsel %vm47, %v45, 0
    %v131 = vsel %vm47, %v46, 0
    %133 = vmatpush.msra.mxu0 0.0
    %134 = vmatpush.msra.mxu0 0.0
    %135 = vmatpush.msra.mxu0 0.0
    %136 = vmatpush.msra.mxu0 0.0
    %137 = vmatpush.msra.mxu0 0.0
    %138 = vmatpush.msra.mxu0 0.0
    %139 = vmatpush.msra.mxu0 0.0
    %140 = vmatpush.msra.mxu0 0.0
    %141 = vmatpush.msra.mxu0 0.0
    %142 = vmatpush.msra.mxu0 0.0
    %143 = vmatpush.msra.mxu0 0.0
    %144 = vmatpush.msra.mxu0 0.0
    %145 = vmatpush.msra.mxu0 0.0
    %146 = vmatpush.msra.mxu0 0.0
    %147 = vmatpush.msra.mxu0 %v118
    %148 = vmatpush.msra.mxu0 %v117
    %149 = vmatmul.f32.gmra.mxu0 %v128
    %v150 = vpop.f32.mrf.mxu0
    %v151 = vadd.f32 %v117, %v150
    %152 = vmatmul.f32.gmra.mxu0 %v131
    %v153 = vpop.f32.mrf.mxu0
    %v154 = vadd.f32 %v118, %v153
    %155 = vdwg.mxu0
    %v157 = vsel %vm47, %v82, 0
    %v160 = vsel %vm47, %v83, 0
    %162 = vmatpush.msra.mxu0 0.0
    %163 = vmatpush.msra.mxu0 0.0
    %164 = vmatpush.msra.mxu0 0.0
    %165 = vmatpush.msra.mxu0 0.0
    %166 = vmatpush.msra.mxu0 0.0
    %167 = vmatpush.msra.mxu0 0.0
    %168 = vmatpush.msra.mxu0 0.0
    %169 = vmatpush.msra.mxu0 0.0
    %170 = vmatpush.msra.mxu0 0.0
    %171 = vmatpush.msra.mxu0 0.0
    %172 = vmatpush.msra.mxu0 0.0
    %173 = vmatpush.msra.mxu0 0.0
    %174 = vmatpush.msra.mxu0 0.0
    %175 = vmatpush.msra.mxu0 0.0
    %176 = vmatpush.msra.mxu0 %v120
    %177 = vmatpush.msra.mxu0 %v119
    %178 = vmatmul.f32.gmra.mxu0 %v157
    %v179 = vpop.f32.mrf.mxu0
    %v180 = vadd.f32 %v119, %v179
    %181 = vmatmul.f32.gmra.mxu0 %v160
    %v182 = vpop.f32.mrf.mxu0
    %v183 = vadd.f32 %v120, %v182
    %184 = vdwg.mxu0
    %v186 = vperm.slane %v126, 0
    %vm188 = vcmask 261120
    %v190 = vsel %vm188, %v151, 0
    %v193 = vsel %vm188, %v154, 0
    %v196 = vsel %vm188, %v180, 0
    %v199 = vsel %vm188, %v183, 0
    %201 = vmatpush.msra.mxu0 0.0
    %202 = vmatpush.msra.mxu0 0.0
    %203 = vmatpush.msra.mxu0 0.0
    %204 = vmatpush.msra.mxu0 0.0
    %205 = vmatpush.msra.mxu0 0.0
    %206 = vmatpush.msra.mxu0 0.0
    %207 = vmatpush.msra.mxu0 0.0
    %208 = vmatpush.msra.mxu0 0.0
    %209 = vmatpush.msra.mxu0 0.0
    %210 = vmatpush.msra.mxu0 0.0
    %211 = vmatpush.msra.mxu0 0.0
    %212 = vmatpush.msra.mxu0 0.0
    %213 = vmatpush.msra.mxu0 %v124
    %214 = vmatpush.msra.mxu0 %v123
    %215 = vmatpush.msra.mxu0 %v122
    %216 = vmatpush.msra.mxu0 %v121
    %217 = vmatmul.f32.gmra.mxu0 %v190
    %v218 = vpop.f32.mrf.mxu0
    %v219 = vadd.f32 %v186, %v218
    %220 = vmatmul.f32.gmra.mxu0 %v193
    %v221 = vpop.f32.mrf.mxu0
    %v222 = vadd.f32 %v186, %v221
    %223 = vmatmul.f32.gmra.mxu0 %v196
    %v224 = vpop.f32.mrf.mxu0
    %v225 = vadd.f32 %v186, %v224
    %226 = vmatmul.f32.gmra.mxu0 %v199
    %v227 = vpop.f32.mrf.mxu0
    %v228 = vadd.f32 %v186, %v227
    %229 = vdwg.mxu0
    %231 = vset.pattern.permute.xlu0 0
    %232 = vperm.xlu0 %231, %v75
    %v233 = vpop.permute.xlu0 %232
    %236 = vset.pattern.permute.xlu0 0
    %237 = vperm.xlu0 %236, %v76
    %v238 = vpop.permute.xlu0 %237
    %241 = vset.pattern.permute.xlu0 0
    %242 = vperm.xlu0 %241, %v111
    %v243 = vpop.permute.xlu0 %242
    %246 = vset.pattern.permute.xlu0 0
    %247 = vperm.xlu0 %246, %v112
    %v248 = vpop.permute.xlu0 %247
    %v250 = vmul.f32 %v219, %v233
    %v251 = vmul.f32 %v222, %v238
    %v252 = vmul.f32 %v225, %v243
    %v253 = vmul.f32 %v228, %v248
    %v254 = vmax.f32 %v250, 0.0
    %v255 = vmax.f32 %v251, 0.0
    %v256 = vmax.f32 %v252, 0.0
    %v257 = vmax.f32 %v253, 0.0
    %v258 = vld [vmem:[%s6] sm:$0xff]
    %v259 = vld [vmem:[%s6 + $0x8] sm:$0xff]
    %v260 = vld [vmem:[%s6 + $0x10] sm:$0xff]
    %v261 = vld [vmem:[%s6 + $0x18] sm:$0xff]
    %v262 = vld [vmem:[%s7] sm:$0x1]
    %v263 = vmul.f32 %v262, 2.0
    %264 = vmatpush.msra.mxu0 0.0
    %265 = vmatpush.msra.mxu0 0.0
    %266 = vmatpush.msra.mxu0 0.0
    %267 = vmatpush.msra.mxu0 0.0
    %268 = vmatpush.msra.mxu0 0.0
    %269 = vmatpush.msra.mxu0 0.0
    %270 = vmatpush.msra.mxu0 0.0
    %271 = vmatpush.msra.mxu0 0.0
    %272 = vmatpush.msra.mxu0 0.0
    %273 = vmatpush.msra.mxu0 0.0
    %274 = vmatpush.msra.mxu0 0.0
    %275 = vmatpush.msra.mxu0 0.0
    %276 = vmatpush.msra.mxu0 0.0
    %277 = vmatpush.msra.mxu0 0.0
    %278 = vmatpush.msra.mxu0 %v255
    %279 = vmatpush.msra.mxu0 %v254
    %280 = vmatmul.f32.gmra.mxu0 %v128
    %v281 = vpop.f32.mrf.mxu0
    %v282 = vadd.f32 %v254, %v281
    %283 = vmatmul.f32.gmra.mxu0 %v131
    %v284 = vpop.f32.mrf.mxu0
    %v285 = vadd.f32 %v255, %v284
    %286 = vdwg.mxu0
    %287 = vmatpush.msra.mxu0 0.0
    %288 = vmatpush.msra.mxu0 0.0
    %289 = vmatpush.msra.mxu0 0.0
    %290 = vmatpush.msra.mxu0 0.0
    %291 = vmatpush.msra.mxu0 0.0
    %292 = vmatpush.msra.mxu0 0.0
    %293 = vmatpush.msra.mxu0 0.0
    %294 = vmatpush.msra.mxu0 0.0
    %295 = vmatpush.msra.mxu0 0.0
    %296 = vmatpush.msra.mxu0 0.0
    %297 = vmatpush.msra.mxu0 0.0
    %298 = vmatpush.msra.mxu0 0.0
    %299 = vmatpush.msra.mxu0 0.0
    %300 = vmatpush.msra.mxu0 0.0
    %301 = vmatpush.msra.mxu0 %v257
    %302 = vmatpush.msra.mxu0 %v256
    %303 = vmatmul.f32.gmra.mxu0 %v157
    %v304 = vpop.f32.mrf.mxu0
    %v305 = vadd.f32 %v256, %v304
    %306 = vmatmul.f32.gmra.mxu0 %v160
    %v307 = vpop.f32.mrf.mxu0
    %v308 = vadd.f32 %v257, %v307
    %309 = vdwg.mxu0
    %v311 = vperm.slane %v263, 0
    %v314 = vsel %vm188, %v282, 0
    %v317 = vsel %vm188, %v285, 0
    %v320 = vsel %vm188, %v305, 0
    %v323 = vsel %vm188, %v308, 0
    %325 = vmatpush.msra.mxu0 0.0
    %326 = vmatpush.msra.mxu0 0.0
    %327 = vmatpush.msra.mxu0 0.0
    %328 = vmatpush.msra.mxu0 0.0
    %329 = vmatpush.msra.mxu0 0.0
    %330 = vmatpush.msra.mxu0 0.0
    %331 = vmatpush.msra.mxu0 0.0
    %332 = vmatpush.msra.mxu0 0.0
    %333 = vmatpush.msra.mxu0 0.0
    %334 = vmatpush.msra.mxu0 0.0
    %335 = vmatpush.msra.mxu0 0.0
    %336 = vmatpush.msra.mxu0 0.0
    %337 = vmatpush.msra.mxu0 %v261
    %338 = vmatpush.msra.mxu0 %v260
    %339 = vmatpush.msra.mxu0 %v259
    %340 = vmatpush.msra.mxu0 %v258
    %341 = vmatmul.f32.gmra.mxu0 %v314
    %v342 = vpop.f32.mrf.mxu0
    %v343 = vadd.f32 %v311, %v342
    %344 = vmatmul.f32.gmra.mxu0 %v317
    %v345 = vpop.f32.mrf.mxu0
    %v346 = vadd.f32 %v311, %v345
    %347 = vmatmul.f32.gmra.mxu0 %v320
    %v348 = vpop.f32.mrf.mxu0
    %v349 = vadd.f32 %v311, %v348
    %350 = vmatmul.f32.gmra.mxu0 %v323
    %v351 = vpop.f32.mrf.mxu0
    %v352 = vadd.f32 %v311, %v351
    %353 = vdwg.mxu0
    %v354 = vmul.f32 %v343, %v233
    %v355 = vmul.f32 %v346, %v238
    %v356 = vmul.f32 %v349, %v243
    %v357 = vmul.f32 %v352, %v248
    %v358 = vmax.f32 %v354, 0.0
    %v359 = vmax.f32 %v355, 0.0
    %v360 = vmax.f32 %v356, 0.0
    %v361 = vmax.f32 %v357, 0.0
    %v362 = vld [vmem:[%s2] sm:$0xff]
    %v363 = vld [vmem:[%s2 + $0x8] sm:$0xff]
    %v364 = vld [vmem:[%s2 + $0x10] sm:$0xff]
    %v365 = vld [vmem:[%s2 + $0x18] sm:$0xff]
    %v366 = vld [vmem:[%s3] sm:$0xff]
    %v367 = vld [vmem:[%s3 + $0x8] sm:$0xff]
    %v368 = vld [vmem:[%s3 + $0x10] sm:$0xff]
    %v369 = vld [vmem:[%s3 + $0x18] sm:$0xff]
    %vm370 = vcmp.gt.f32.partialorder %v362, 0.0
    %vm371 = vcmp.gt.f32.partialorder %v363, 0.0
    %vm372 = vcmp.gt.f32.partialorder %v366, 0.0
    %vm373 = vcmp.gt.f32.partialorder %v367, 0.0
    %v374 = vsel %vm79, 1, 0
    %v375 = vsel %vm80, 1, 0
    %vm376 = vcmp.eq.s32.totalorder %v374, 1
    %vm377 = vcmp.eq.s32.totalorder %v375, 1
    %v378 = vsel %vm376, %v358, -1e+12
    %v379 = vsel %vm377, %v359, -1e+12
    %v380 = vsel %vm188, %v378, -inf
    %v381 = vsel %vm188, %v379, -inf
    %v382 = vmax.f32 %v380, %v381
    %v383 = vrot.slane %v382, 4
    %v384 = vmax.f32 %v382, %v383
    %v385 = vrot.slane %v384, 2
    %v386 = vmax.f32 %v384, %v385
    %v387 = vrot.slane %v386, 1
    %v388 = vmax.f32 %v386, %v387
    %v389 = vsel %vm370, 1, 0
    %v390 = vsel %vm371, 1, 0
    %391 = vset.pattern.permute.xlu0 0
    %392 = vperm.xlu0 %391, %v389
    %v393 = vpop.permute.xlu0 %392
    %394 = vset.pattern.permute.xlu0 0
    %395 = vperm.xlu0 %394, %v390
    %v396 = vpop.permute.xlu0 %395
    %vm397 = vcmp.eq.s32.totalorder %v393, 1
    %vm398 = vcmp.eq.s32.totalorder %v396, 1
    %v399 = vsel %vm397, %v358, -1e+12
    %v400 = vsel %vm398, %v359, -1e+12
    %v401 = vsel %vm188, %v399, -inf
    %v402 = vsel %vm188, %v400, -inf
    %v403 = vmax.f32 %v401, %v402
    %v404 = vrot.slane %v403, 4
    %v405 = vmax.f32 %v403, %v404
    %v406 = vrot.slane %v405, 2
    %v407 = vmax.f32 %v405, %v406
    %v408 = vrot.slane %v407, 1
    %v409 = vmax.f32 %v407, %v408
    %v410 = vsel %vm372, 1, 0
    %v411 = vsel %vm373, 1, 0
    %412 = vset.pattern.permute.xlu0 0
    %413 = vperm.xlu0 %412, %v410
    %v414 = vpop.permute.xlu0 %413
    %415 = vset.pattern.permute.xlu0 0
    %416 = vperm.xlu0 %415, %v411
    %v417 = vpop.permute.xlu0 %416
    %vm418 = vcmp.eq.s32.totalorder %v414, 1
    %vm419 = vcmp.eq.s32.totalorder %v417, 1
    %v420 = vsel %vm418, %v358, -1e+12
    %v421 = vsel %vm419, %v359, -1e+12
    %v422 = vsel %vm188, %v420, -inf
    %v423 = vsel %vm188, %v421, -inf
    %v424 = vmax.f32 %v422, %v423
    %v425 = vrot.slane %v424, 4
    %v426 = vmax.f32 %v424, %v425
    %v427 = vrot.slane %v426, 2
    %v428 = vmax.f32 %v426, %v427
    %v429 = vrot.slane %v428, 1
    %v430 = vmax.f32 %v428, %v429
    %vm431 = vcmp.gt.f32.partialorder %v364, 0.0
    %vm432 = vcmp.gt.f32.partialorder %v365, 0.0
    %vm433 = vcmp.gt.f32.partialorder %v368, 0.0
    %vm434 = vcmp.gt.f32.partialorder %v369, 0.0
    %v435 = vsel %vm115, 1, 0
    %v436 = vsel %vm116, 1, 0
    %vm437 = vcmp.eq.s32.totalorder %v435, 1
    %vm438 = vcmp.eq.s32.totalorder %v436, 1
    %v439 = vsel %vm437, %v360, -1e+12
    %v440 = vsel %vm438, %v361, -1e+12
    %v441 = vsel %vm188, %v439, -inf
    %v442 = vsel %vm188, %v440, -inf
    %v443 = vmax.f32 %v441, %v442
    %v444 = vrot.slane %v443, 4
    %v445 = vmax.f32 %v443, %v444
    %v446 = vrot.slane %v445, 2
    %v447 = vmax.f32 %v445, %v446
    %v448 = vrot.slane %v447, 1
    %v449 = vmax.f32 %v447, %v448
    %v450 = vsel %vm431, 1, 0
    %v451 = vsel %vm432, 1, 0
    %452 = vset.pattern.permute.xlu0 0
    %453 = vperm.xlu0 %452, %v450
    %v454 = vpop.permute.xlu0 %453
    %455 = vset.pattern.permute.xlu0 0
    %456 = vperm.xlu0 %455, %v451
    %v457 = vpop.permute.xlu0 %456
    %vm458 = vcmp.eq.s32.totalorder %v454, 1
    %vm459 = vcmp.eq.s32.totalorder %v457, 1
    %v460 = vsel %vm458, %v360, -1e+12
    %v461 = vsel %vm459, %v361, -1e+12
    %v462 = vsel %vm188, %v460, -inf
    %v463 = vsel %vm188, %v461, -inf
    %v464 = vmax.f32 %v462, %v463
    %v465 = vrot.slane %v464, 4
    %v466 = vmax.f32 %v464, %v465
    %v467 = vrot.slane %v466, 2
    %v468 = vmax.f32 %v466, %v467
    %v469 = vrot.slane %v468, 1
    %v470 = vmax.f32 %v468, %v469
    %v471 = vsel %vm433, 1, 0
    %v472 = vsel %vm434, 1, 0
    %473 = vset.pattern.permute.xlu0 0
    %474 = vperm.xlu0 %473, %v471
    %v475 = vpop.permute.xlu0 %474
    %476 = vset.pattern.permute.xlu0 0
    %477 = vperm.xlu0 %476, %v472
    %v478 = vpop.permute.xlu0 %477
    %vm479 = vcmp.eq.s32.totalorder %v475, 1
    %vm480 = vcmp.eq.s32.totalorder %v478, 1
    %v481 = vsel %vm479, %v360, -1e+12
    %v482 = vsel %vm480, %v361, -1e+12
    %v483 = vsel %vm188, %v481, -inf
    %v484 = vsel %vm188, %v482, -inf
    %v485 = vmax.f32 %v483, %v484
    %v486 = vrot.slane %v485, 4
    %v487 = vmax.f32 %v485, %v486
    %v488 = vrot.slane %v487, 2
    %v489 = vmax.f32 %v487, %v488
    %v490 = vrot.slane %v489, 1
    %v491 = vmax.f32 %v489, %v490
    %vm492 = vcmask 1040384
    %v493 = vsel %vm492, %v388, %v449
    %v494 = vsel %vm492, %v409, %v470
    %v495 = vsel %vm492, %v430, %v491
    %v496 = vld [vmem:[%s8] sm:$0xff]
    %v497 = vld [vmem:[%s8 + $0x8] sm:$0xff]
    %v498 = vld [vmem:[%s8 + $0x10] sm:$0xff]
    %v499 = vld [vmem:[%s8 + $0x18] sm:$0xff]
    %v500 = vld [vmem:[%s8 + $0x20] sm:$0xff]
    %v501 = vld [vmem:[%s8 + $0x28] sm:$0xff]
    %v502 = vld [vmem:[%s8 + $0x30] sm:$0xff]
    %v503 = vld [vmem:[%s8 + $0x38] sm:$0xff]
    %v504 = vld [vmem:[%s8 + $0x40] sm:$0xff]
    %v505 = vld [vmem:[%s8 + $0x48] sm:$0xff]
    %v506 = vld [vmem:[%s8 + $0x50] sm:$0xff]
    %v507 = vld [vmem:[%s8 + $0x58] sm:$0xff]
    %v509 = vsel %vm188, %v494, 0
    %511 = vmatpush.msra.mxu0 0.0
    %512 = vmatpush.msra.mxu0 0.0
    %513 = vmatpush.msra.mxu0 0.0
    %514 = vmatpush.msra.mxu0 0.0
    %515 = vmatpush.msra.mxu0 0.0
    %516 = vmatpush.msra.mxu0 0.0
    %517 = vmatpush.msra.mxu0 0.0
    %518 = vmatpush.msra.mxu0 0.0
    %519 = vmatpush.msra.mxu0 0.0
    %520 = vmatpush.msra.mxu0 0.0
    %521 = vmatpush.msra.mxu0 0.0
    %522 = vmatpush.msra.mxu0 0.0
    %523 = vmatpush.msra.mxu0 %v503
    %524 = vmatpush.msra.mxu0 %v502
    %525 = vmatpush.msra.mxu0 %v501
    %526 = vmatpush.msra.mxu0 %v500
    %527 = vmatmul.f32.gmra.mxu0 %v509
    %v528 = vpop.f32.mrf.mxu0
    %v529 = vadd.f32 0.0, %v528
    %530 = vdwg.mxu0
    %v532 = vsel %vm188, %v493, 0
    %534 = vmatpush.msra.mxu0 0.0
    %535 = vmatpush.msra.mxu0 0.0
    %536 = vmatpush.msra.mxu0 0.0
    %537 = vmatpush.msra.mxu0 0.0
    %538 = vmatpush.msra.mxu0 0.0
    %539 = vmatpush.msra.mxu0 0.0
    %540 = vmatpush.msra.mxu0 0.0
    %541 = vmatpush.msra.mxu0 0.0
    %542 = vmatpush.msra.mxu0 0.0
    %543 = vmatpush.msra.mxu0 0.0
    %544 = vmatpush.msra.mxu0 0.0
    %545 = vmatpush.msra.mxu0 0.0
    %546 = vmatpush.msra.mxu0 %v499
    %547 = vmatpush.msra.mxu0 %v498
    %548 = vmatpush.msra.mxu0 %v497
    %549 = vmatpush.msra.mxu0 %v496
    %550 = vmatmul.f32.gmra.mxu0 %v532
    %v551 = vpop.f32.mrf.mxu0
    %v552 = vadd.f32 %v529, %v551
    %553 = vdwg.mxu0
    %v555 = vsel %vm188, %v495, 0
    %557 = vmatpush.msra.mxu0 0.0
    %558 = vmatpush.msra.mxu0 0.0
    %559 = vmatpush.msra.mxu0 0.0
    %560 = vmatpush.msra.mxu0 0.0
    %561 = vmatpush.msra.mxu0 0.0
    %562 = vmatpush.msra.mxu0 0.0
    %563 = vmatpush.msra.mxu0 0.0
    %564 = vmatpush.msra.mxu0 0.0
    %565 = vmatpush.msra.mxu0 0.0
    %566 = vmatpush.msra.mxu0 0.0
    %567 = vmatpush.msra.mxu0 0.0
    %568 = vmatpush.msra.mxu0 0.0
    %569 = vmatpush.msra.mxu0 %v507
    %570 = vmatpush.msra.mxu0 %v506
    %571 = vmatpush.msra.mxu0 %v505
    %572 = vmatpush.msra.mxu0 %v504
    %573 = vmatmul.f32.gmra.mxu0 %v555
    %v574 = vpop.f32.mrf.mxu0
    %v575 = vadd.f32 0.0, %v574
    %576 = vdwg.mxu0
    %v577 = vadd.f32 %v552, %v575
    %v578 = vld [vmem:[%s9] sm:$0x1]
    %v580 = vperm.slane %v578, 0
    %v582 = vadd.f32 %v577, %v580
    %v583 = vmax.f32 %v582, 0.0
    %v584 = vld [vmem:[%s10] sm:$0xff]
    %v585 = vld [vmem:[%s10 + $0x8] sm:$0xff]
    %v586 = vld [vmem:[%s10 + $0x10] sm:$0xff]
    %v587 = vld [vmem:[%s10 + $0x18] sm:$0xff]
    %v588 = vld [vmem:[%s11] sm:$0x1]
    %v590 = vperm.slane %v588, 0
    %v593 = vsel %vm188, %v583, 0
    %595 = vmatpush.msra.mxu0 0.0
    %596 = vmatpush.msra.mxu0 0.0
    %597 = vmatpush.msra.mxu0 0.0
    %598 = vmatpush.msra.mxu0 0.0
    %599 = vmatpush.msra.mxu0 0.0
    %600 = vmatpush.msra.mxu0 0.0
    %601 = vmatpush.msra.mxu0 0.0
    %602 = vmatpush.msra.mxu0 0.0
    %603 = vmatpush.msra.mxu0 0.0
    %604 = vmatpush.msra.mxu0 0.0
    %605 = vmatpush.msra.mxu0 0.0
    %606 = vmatpush.msra.mxu0 0.0
    %607 = vmatpush.msra.mxu0 %v587
    %608 = vmatpush.msra.mxu0 %v586
    %609 = vmatpush.msra.mxu0 %v585
    %610 = vmatpush.msra.mxu0 %v584
    %611 = vmatmul.f32.gmra.mxu0 %v593
    %v612 = vpop.f32.mrf.mxu0
    %v613 = vadd.f32 %v590, %v612
    %614 = vdwg.mxu0
    %vm615 = vcmask 58368
    %616 = vst.msk [vmem:[#allocation2] sm:$0x3] %vm615, %v613
    %vm617 = vcmask 254976
    %618 = vst.msk [vmem:[#allocation4] sm:$0x3] %vm617, %v493
    // Predicated region
    $region50: #{gcn_classifier_forward.1} parent=1 // pred_check
      _
    $region51: #{gcn_classifier_forward.1} parent=1 // pred_check_branch
      %620 = sbr.rel (0) target = $region53
    $region52: #{gcn_classifier_forward.1} parent=1 // pred_region
      %622 = vsyncadd [#allocation3], 0
      %s624 = sshll.u32 [#allocation2], 4
      %s625 = int_to_ptr.vmem [resolvable:$true] %s624
      %s626 = sshll.u32 %s12, 4
      %s627 = int_to_ptr.hbm [resolvable:$true] %s626
      %629 = dma.vmem_to_hbm [thread:$0]  %s625, 32, %s627, [#allocation3]
    $region53: #{gcn_classifier_forward.1} parent=1 // pred_fallthru
      _
    // Predicated region
    $region54: #{gcn_classifier_forward.1} parent=1 // pred_check
      _
    $region55: #{gcn_classifier_forward.1} parent=1 // pred_check_branch
      %631 = sbr.rel (0) target = $region57
    $region56: #{gcn_classifier_forward.1} parent=1 // pred_region
      %633 = vsyncadd [#allocation5], 0
      %s635 = sshll.u32 [#allocation4], 4
      %s636 = int_to_ptr.vmem [resolvable:$true] %s635
      %s637 = sshll.u32 %s13, 4
      %s638 = int_to_ptr.hbm [resolvable:$true] %s637
      %640 = dma.vmem_to_hbm [thread:$0]  %s636, 32, %s638, [#allocation5]
    $region57: #{gcn_classifier_forward.1} parent=1 // pred_fallthru
      _
    // Predicated region
    $region58: #{gcn_classifier_forward.1} parent=1 // pred_check
      _
    $region59: #{gcn_classifier_forward.1} parent=1 // pred_check_branch
      %642 = sbr.rel (0) target = $region61
    $region60: #{gcn_classifier_forward.1} parent=1 // pred_region
      %644 = dma.done [#allocation3], 32
    $region61: #{gcn_classifier_forward.1} parent=1 // pred_fallthru
      _
    // Predicated region
    $region62: #{gcn_classifier_forward.1} parent=1 // pred_check
      _
    $region63: #{gcn_classifier_forward.1} parent=1 // pred_check_branch
      %646 = sbr.rel (0) target = $region65
    $region64: #{gcn_classifier_forward.1} parent=1 // pred_region
      %648 = dma.done [#allocation5], 32
    $region65: #{gcn_classifier_forward.1} parent=1 // pred_fallthru
      _
    %649 = vsyncpa [#allocation3], 1
    %650 = vsyncpa [#allocation5], 1

</llo_original>
